<compile_context>
chip_gen: v5e
topology: v5e:2x2
jax: 0.10.0
libtpu: 0.0.40
codegen_flags: <defaults>
</compile_context>

<pallas_src>
import functools

import jax
import jax.numpy as jnp
from jax.experimental import pallas as pl
from jax.experimental.pallas import tpu as pltpu


# ---------------------------------------------------------------------------
# GradReverse: identity forward, (-constant * grad) backward — applied outside
# the kernel at the call boundary.
# TODO(synk): the pallas_call itself has no registered VJP; end-to-end training
# through this kernel would additionally need a custom_vjp around the matmuls.
@functools.partial(jax.custom_vjp, nondiff_argnums=(1,))
def grad_reverse(x, constant):
    return x


def _grad_reverse_fwd(x, constant):
    return x, None


def _grad_reverse_bwd(constant, _, g):
    return (-constant * g,)


grad_reverse.defvjp(_grad_reverse_fwd, _grad_reverse_bwd)


# ---------------------------------------------------------------------------
# Kernel body (shared by the no-grid fast path and the batch-tiled path).
def domain_classifier_kernel(x_ref, w1_ref, b1_ref, w2d_ref, b2d_ref, out_ref):
    # fc1 + ReLU.  x stays f32 in HBM; cast to the (bf16) MXU dtype here so the
    # cast is free VPU filler under the DMA shadow.  f32 accumulate on the MXU.
    x = x_ref[...].astype(w1_ref.dtype)
    h = jnp.dot(x, w1_ref[...], preferred_element_type=jnp.float32)
    h = jnp.maximum(h + b1_ref[...], 0.0)                    # (TM, 128) full-lane

    # fc2 + 2-class log_softmax folded into a single difference "mat-vec":
    #   d   = h @ (w2[:,1] - w2[:,0]) + (b2[1] - b2[0])
    #   out = [-softplus(d), d - softplus(d)]
    # implemented as an elementwise multiply + lane reduction (XLU) — no MXU op.
    d = jnp.sum(h * w2d_ref[...], axis=1, keepdims=True) + b2d_ref[...]  # (TM, 1)
    sp = jnp.maximum(d, 0.0) + jnp.log1p(jnp.exp(-jnp.abs(d)))          # softplus
    out = jnp.concatenate([-sp, d - sp], axis=1)                         # (TM, 2)
    out_ref[...] = out.astype(out_ref.dtype)


def _round_up(n, m):
    return ((n + m - 1) // m) * m


# ---------------------------------------------------------------------------
def domain_classifier(x, w1, b1, w2, b2, constant=1.0, *,
                      block_m=2048, use_bf16_matmul=True):
    """x: (B, 768); w1: (768, 100); b1: (1, 100); w2: (100, 2); b2: (1, 2).

    Weights may also be passed pre-padded to a hidden dim of 128.
    """
    x = grad_reverse(x, constant)            # identity in the forward pass
    B, in_f = x.shape
    hid = w1.shape[1]
    out_f = w2.shape[1]

    # ---- one-time parameter prep (tiny, resident arrays only) --------------
    hid_p = _round_up(hid, 128)
    if hid_p != hid:
        # Zero-pad hidden dim -> full 128-lane unmasked vreg work in the kernel.
        w1 = jnp.pad(w1, ((0, 0), (0, hid_p - hid)))
        b1 = jnp.pad(b1, ((0, 0), (0, hid_p - hid)))
        w2 = jnp.pad(w2, ((0, hid_p - hid), (0, 0)))
    if use_bf16_matmul:
        w1 = w1.astype(jnp.bfloat16)         # tiny, resident; x is cast in-kernel
    # Fold fc2 + 2-class log_softmax into a difference vector (row layout).
    w2d = (w2[:, 1] - w2[:, 0]).reshape(1, hid_p).astype(jnp.float32)    # (1, H)
    b2d = (b2[:, 1:2] - b2[:, 0:1]).astype(jnp.float32)                  # (1, 1)

    # ---- tiny-batch fast path: one VMEM block, no grid / pipelining --------
    if B <= 512:
        vmem = pl.BlockSpec(memory_space=pltpu.MemorySpace.VMEM)
        return pl.pallas_call(
            domain_classifier_kernel,
            out_shape=jax.ShapeDtypeStruct((B, out_f), jnp.float32),
            in_specs=[vmem] * 5,
            out_specs=vmem,
        )(x, w1, b1, w2d, b2d)

    # ---- batch-tiled, pipelined path ----------------------------------------
    # Round the tile to B's size for mid-size batches so the ragged last block
    # isn't mostly empty; grid handles the remainder (no jnp.pad of x).
    bm = min(block_m, _round_up(B, 512))
    num_tiles = pl.cdiv(B, bm)

    cost = pl.CostEstimate(
        flops=2 * B * in_f * hid_p + 4 * B * hid_p,
        transcendentals=2 * B,
        bytes_accessed=(B * in_f * x.dtype.itemsize
                        + in_f * hid_p * w1.dtype.itemsize
                        + B * out_f * 4),
    )

    out = pl.pallas_call(
        domain_classifier_kernel,
        out_shape=jax.ShapeDtypeStruct((B, out_f), jnp.float32),
        grid=(num_tiles,),
        in_specs=[
            pl.BlockSpec((bm, in_f), lambda i: (i, 0)),     # x: streamed f32
            pl.BlockSpec((in_f, hid_p), lambda i: (0, 0)),  # w1: resident
            pl.BlockSpec((1, hid_p), lambda i: (0, 0)),     # b1: resident
            pl.BlockSpec((1, hid_p), lambda i: (0, 0)),     # w2 diff: resident
            pl.BlockSpec((1, 1), lambda i: (0, 0)),         # b2 diff: resident
        ],
        out_specs=pl.BlockSpec((bm, out_f), lambda i: (i, 0)),
        compiler_params=pltpu.CompilerParams(
            # Shards the batch grid across v7x's 2 TCs (no-op on v5e/v6e).
            dimension_semantics=("parallel",),
            # Double-buffered f32 x tiles at bm=2048 are ~12 MiB; raise the
            # scoped-VMEM limit explicitly so v5e's 16 MiB default isn't a cap.
            vmem_limit_bytes=32 << 20,
        ),
        cost_estimate=cost,
    )(x, w1, b1, w2d, b2d)
    return out


# ---------------------------------------------------------------------------
def init_params(key):
    """nn.Linear-style init (uniform +-1/sqrt(fan_in)); weights pre-transposed."""
    k1, k2, k3, k4 = jax.random.split(key, 4)
    in1, out1 = 48 * 4 * 4, 100
    in2, out2 = 100, 2
    bound1 = 1.0 / jnp.sqrt(in1)
    bound2 = 1.0 / jnp.sqrt(in2)
    w1 = jax.random.uniform(k1, (in1, out1), jnp.float32, -bound1, bound1)
    b1 = jax.random.uniform(k2, (1, out1), jnp.float32, -bound1, bound1)
    w2 = jax.random.uniform(k3, (in2, out2), jnp.float32, -bound2, bound2)
    b2 = jax.random.uniform(k4, (1, out2), jnp.float32, -bound2, bound2)
    return w1, b1, w2, b2


def reference(x, w1, b1, w2, b2, mxu_dtype=jnp.float32):
    h = jnp.dot(x.astype(mxu_dtype), w1.astype(mxu_dtype),
                preferred_element_type=jnp.float32) + b1
    h = jnp.maximum(h, 0.0)
    logits = jnp.dot(h, w2, preferred_element_type=jnp.float32) + b2
    return jax.nn.log_softmax(logits, axis=1)


if __name__ == "__main__":
    key = jax.random.PRNGKey(0)
    kx, kx2, kp = jax.random.split(key, 3)
    w1, b1, w2, b2 = init_params(kp)
    constant = 1.0   # GradReverse constant; forward is identity

    # 1) tiny batch -> no-grid fast path.
    x_small = jax.random.normal(kx, (2, 48 * 4 * 4), jnp.float32)
    #   a) default (bf16 fc1 operands) vs bf16 reference
    out_small = jax.block_until_ready(
        domain_classifier(x_small, w1, b1, w2, b2, constant))
    assert out_small.shape == (2, 2)
    ref_small_bf16 = reference(x_small, w1, b1, w2, b2, mxu_dtype=jnp.bfloat16)
    assert jnp.allclose(out_small, ref_small_bf16, atol=2e-3, rtol=2e-3)
    #   b) strict f32 check with use_bf16_matmul=False
    out_small_f32 = jax.block_until_ready(
        domain_classifier(x_small, w1, b1, w2, b2, constant,
                          use_bf16_matmul=False))
    ref_small_f32 = reference(x_small, w1, b1, w2, b2)
    assert jnp.allclose(out_small_f32, ref_small_f32, atol=1e-4, rtol=1e-4)

    # 2) larger ragged batch -> tiled/pipelined path (block_m=512 -> 3 grid
    #    steps, last block out-of-bounds and trimmed on writeback; no jnp.pad).
    B = 1200
    x_big = jax.random.normal(kx2, (B, 48 * 4 * 4), jnp.float32)
    out_big = jax.block_until_ready(
        domain_classifier(x_big, w1, b1, w2, b2, constant, block_m=512))
    assert out_big.shape == (B, 2)
    assert jnp.all(jnp.isfinite(out_big))
    ref_big_bf16 = reference(x_big, w1, b1, w2, b2, mxu_dtype=jnp.bfloat16)
    assert jnp.allclose(out_big, ref_big_bf16, atol=2e-3, rtol=2e-3)
    assert jnp.allclose(out_big, reference(x_big, w1, b1, w2, b2),
                        atol=3e-2, rtol=3e-2)

    print("KERNEL_OK")
</pallas_src>

<mosaic_0001>
module attributes {stable_mosaic.version = 11 : i64} {
  func.func @domain_classifier_kernel(%arg0: memref<2x768xf32, #tpu.memory_space<vmem>>, %arg1: memref<768x128xbf16, #tpu.memory_space<vmem>>, %arg2: memref<1x128xf32, #tpu.memory_space<vmem>>, %arg3: memref<1x128xf32, #tpu.memory_space<vmem>>, %arg4: memref<1x1xf32, #tpu.memory_space<vmem>>, %arg5: memref<2x2xf32, #tpu.memory_space<vmem>>) attributes {dimension_semantics = [], scalar_prefetch = 0 : i64, scratch_operands = 0 : i64, tpu.core_type = #tpu.core_type<tc>} {
    %c0 = arith.constant 0 : index
    %c0_0 = arith.constant 0 : index
    %0 = vector.load %arg0[%c0, %c0_0] : memref<2x768xf32, #tpu.memory_space<vmem>>, vector<2x768xf32>
    %1 = arith.truncf %0 : vector<2x768xf32> to vector<2x768xbf16>
    %c0_1 = arith.constant 0 : index
    %c0_2 = arith.constant 0 : index
    %2 = vector.load %arg1[%c0_1, %c0_2] : memref<768x128xbf16, #tpu.memory_space<vmem>>, vector<768x128xbf16>
    %cst = arith.constant dense<0.000000e+00> : vector<2x128xf32>
    %3 = tpu.matmul %1, %2, %cst {dimension_numbers = #tpu.dot_dimension_numbers<[1], [0], [0], [1], [0, 0, 1, 1], [], []>} : vector<2x768xbf16>, vector<768x128xbf16>, vector<2x128xf32> -> vector<2x128xf32>
    %c0_3 = arith.constant 0 : index
    %c0_4 = arith.constant 0 : index
    %4 = vector.load %arg2[%c0_3, %c0_4] : memref<1x128xf32, #tpu.memory_space<vmem>>, vector<1x128xf32>
    %5 = vector.broadcast %4 : vector<1x128xf32> to vector<2x128xf32>
    %6 = arith.addf %3, %5 : vector<2x128xf32>
    %cst_5 = arith.constant 0.000000e+00 : f32
    %7 = vector.broadcast %cst_5 : f32 to vector<2x128xf32>
    %8 = arith.maximumf %6, %7 : vector<2x128xf32>
    %c0_6 = arith.constant 0 : index
    %c0_7 = arith.constant 0 : index
    %9 = vector.load %arg3[%c0_6, %c0_7] : memref<1x128xf32, #tpu.memory_space<vmem>>, vector<1x128xf32>
    %10 = vector.broadcast %9 : vector<1x128xf32> to vector<2x128xf32>
    %11 = arith.mulf %8, %10 : vector<2x128xf32>
    %cst_8 = arith.constant dense<0.000000e+00> : vector<2xf32>
    %12 = vector.multi_reduction <add>, %11, %cst_8 [1] : vector<2x128xf32> to vector<2xf32>
    %13 = vector.shape_cast %12 : vector<2xf32> to vector<2x1xf32>
    %c0_9 = arith.constant 0 : index
    %c0_10 = arith.constant 0 : index
    %14 = vector.load %arg4[%c0_9, %c0_10] : memref<1x1xf32, #tpu.memory_space<vmem>>, vector<1x1xf32>
    %15 = vector.broadcast %14 : vector<1x1xf32> to vector<2x1xf32>
    %16 = arith.addf %13, %15 : vector<2x1xf32>
    %cst_11 = arith.constant 0.000000e+00 : f32
    %17 = vector.broadcast %cst_11 : f32 to vector<2x1xf32>
    %18 = arith.maximumf %16, %17 : vector<2x1xf32>
    %19 = math.absf %16 : vector<2x1xf32>
    %cst_12 = arith.constant 0.000000e+00 : f32
    %20 = vector.broadcast %cst_12 : f32 to vector<2x1xf32>
    %21 = arith.subf %20, %19 : vector<2x1xf32>
    %22 = math.exp %21 : vector<2x1xf32>
    %23 = math.log1p %22 : vector<2x1xf32>
    %24 = arith.addf %18, %23 : vector<2x1xf32>
    %cst_13 = arith.constant 0.000000e+00 : f32
    %25 = vector.broadcast %cst_13 : f32 to vector<2x1xf32>
    %26 = arith.subf %25, %24 : vector<2x1xf32>
    %27 = arith.subf %16, %24 : vector<2x1xf32>
    %28 = tpu.concatenate %26, %27 in 1 : vector<2x1xf32>, vector<2x1xf32> -> vector<2x2xf32>
    %c0_14 = arith.constant 0 : index
    %c0_15 = arith.constant 0 : index
    %29 = vector.load %arg5[%c0_14, %c0_15] : memref<2x2xf32, #tpu.memory_space<vmem>>, vector<2x2xf32>
    tpu.vector_store %arg5[%c0_14, %c0_15], %28 {strides = array<i32>} : memref<2x2xf32, #tpu.memory_space<vmem>>, vector<2x2xf32>,
    return
  }
}

</mosaic_0001>

<llo_original>
// kernel: tpu_custom_call.1
$region0: #{tpu_custom_call.1}
  #allocation0 [shape = 'u32[]', space=smem, size = 0x4, offset = 0x4, fixed_abs, tag = 'smem constant byte address 0x4 - core index']
  #allocation1 [shape = 'u32[72,128]{1,0:T(1,128)}', space=vmem, size = 0x9000, scoped, tag = 'internal scratch']
  #allocation2 [shape = 'f32[1,1]{1,0:T(1,128)S(1)}', space=vmem, size = 0x200, scoped, tag = 'scoped memory for tpu_custom_call.1']
  %s0 = inlined_call_operand.hbm [shape: f32[2,768], index: 0, kind: input, shape index: {}]
  %s1 = inlined_call_operand.hbm [shape: bf16[768,128], index: 1, kind: input, shape index: {}]
  %s2 = inlined_call_operand.vmem [shape: f32[1,128], index: 2, kind: input, shape index: {}]
  %s3 = inlined_call_operand.vmem [shape: f32[1,128], index: 3, kind: input, shape index: {}]
  %s4 = inlined_call_operand.<no memory space> [shape: f32[1,1], index: 4, kind: input, shape index: {}]
  %s5 = inlined_call_operand.hbm [shape: f32[2,2], index: 5, kind: output, shape index: {}]
  %s6 = sld [smem:[#allocation0]]
  $region38: #{tpu_custom_call.1} parent=0
    _
  %s8 = ssub.s32 1, %s6
  %s9 = scalar_select 0, %s8, %s6
  %v10 = vstv %s4
  %11 = vst [vmem:[#allocation2] sm:$0x1] %v10
  $region1: #{tpu_custom_call.1} parent=0
    #allocation3 [shape = 'u8[6144]{0}', space=vmem, size = 0x1800, scoped, tag = 'input window, operand 0, single buffered']
    #allocation4 [shape = 's32[1]{0}', space=sflag, size = 0x4, scoped, tag = 'scoped memory for tpu_custom_call.1']
    #allocation5 [shape = 's32[1]{0}', space=sflag, size = 0x4, scoped, tag = 'scoped memory for tpu_custom_call.1']
    #allocation6 [shape = 'u8[196608]{0}', space=vmem, size = 0x30000, scoped, tag = 'input window, operand 1, single buffered']
    #allocation7 [shape = 's32[1]{0}', space=sflag, size = 0x4, scoped, tag = 'scoped memory for tpu_custom_call.1']
    #allocation8 [shape = 'u8[1024]{0}', space=vmem, size = 0x400, scoped, tag = 'output window, operand 0, single buffered']
    %12 = vsyncpa [#allocation4], 0
    %13 = vsyncpa [#allocation7], 0
    %14 = vsyncpa [#allocation5], 0
    // Predicated region
    $region2: #{tpu_custom_call.1} parent=1 // pred_check
      _
    $region3: #{tpu_custom_call.1} parent=1 // pred_check_branch
      %16 = sbr.rel (0) target = $region5
    $region4: #{tpu_custom_call.1} parent=1 // pred_region
      %18 = vsyncadd [#allocation4], 0
      %s20 = sshll.u32 %s0, 4
      %s21 = int_to_ptr.hbm [resolvable:$true] %s20
      %s22 = sshll.u32 [#allocation3], 4
      %s23 = int_to_ptr.vmem [resolvable:$true] %s22
      %25 = dma.hbm_to_vmem [thread:$0]  %s21, 192, %s23, [#allocation4]
    $region5: #{tpu_custom_call.1} parent=1 // pred_fallthru
      _
    // Predicated region
    $region6: #{tpu_custom_call.1} parent=1 // pred_check
      _
    $region7: #{tpu_custom_call.1} parent=1 // pred_check_branch
      %27 = sbr.rel (0) target = $region9
    $region8: #{tpu_custom_call.1} parent=1 // pred_region
      %29 = vsyncadd [#allocation7], 0
      %s30 = sshll.u32 %s1, 4
      %s31 = int_to_ptr.hbm [resolvable:$true] %s30
      %s32 = sshll.u32 [#allocation6], 4
      %s33 = int_to_ptr.vmem [resolvable:$true] %s32
      %38 = dma.hbm_to_vmem [thread:$0]  %s31, 6144, %s33, [#allocation7], 64, 64, 4
    $region9: #{tpu_custom_call.1} parent=1 // pred_fallthru
      _
    // Predicated region
    $region10: #{tpu_custom_call.1} parent=1 // pred_check
      _
    $region11: #{tpu_custom_call.1} parent=1 // pred_check_branch
      %40 = sbr.rel (0) target = $region13
    $region12: #{tpu_custom_call.1} parent=1 // pred_region
      _
    $region13: #{tpu_custom_call.1} parent=1 // pred_fallthru
      _
    // Predicated region
    $region14: #{tpu_custom_call.1} parent=1 // pred_check
      _
    $region15: #{tpu_custom_call.1} parent=1 // pred_check_branch
      %42 = sbr.rel (0) target = $region17
    $region16: #{tpu_custom_call.1} parent=1 // pred_region
      _
    $region17: #{tpu_custom_call.1} parent=1 // pred_fallthru
      _
    // Predicated region
    $region18: #{tpu_custom_call.1} parent=1 // pred_check
      _
    $region19: #{tpu_custom_call.1} parent=1 // pred_check_branch
      %44 = sbr.rel (0) target = $region21
    $region20: #{tpu_custom_call.1} parent=1 // pred_region
      _
    $region21: #{tpu_custom_call.1} parent=1 // pred_fallthru
      _
    // Predicated region
    $region22: #{tpu_custom_call.1} parent=1 // pred_check
      _
    $region23: #{tpu_custom_call.1} parent=1 // pred_check_branch
      %46 = sbr.rel (0) target = $region25
    $region24: #{tpu_custom_call.1} parent=1 // pred_region
      %48 = dma.done [#allocation4], 192
    $region25: #{tpu_custom_call.1} parent=1 // pred_fallthru
      _
    // Predicated region
    $region26: #{tpu_custom_call.1} parent=1 // pred_check
      _
    $region27: #{tpu_custom_call.1} parent=1 // pred_check_branch
      %50 = sbr.rel (0) target = $region29
    $region28: #{tpu_custom_call.1} parent=1 // pred_region
      %52 = dma.done [#allocation7], 6144
    $region29: #{tpu_custom_call.1} parent=1 // pred_fallthru
      _
    %v53 = vld [vmem:[#allocation3] sm:$0xff]
    %v54 = vld [vmem:[#allocation3 + $0x8] sm:$0xf]
    %57 = vst [vmem:[#allocation1] ss:$4 sm:$0xff] %v53
    %s58 = scalar_lea.vmem [#allocation1], 32
    %59 = vst [vmem:[%s58] ss:$4 sm:$0xff] %v54
    %v60 = vld.sshfl [vmem:[#allocation1] sm:$0xff pattern:$0x73625140]
    %v61 = vld.sshfl [vmem:[#allocation1 + $0x8] sm:$0xff pattern:$0x73625140]
    %v62 = vld.sshfl [vmem:[#allocation1 + $0x10] sm:$0xff pattern:$0x73625140]
    %v63 = vld.sshfl [vmem:[#allocation1 + $0x18] sm:$0xff pattern:$0x73625140]
    %v64 = vld.sshfl [vmem:[#allocation1 + $0x20] sm:$0xff pattern:$0x73625140]
    %v65 = vld.sshfl [vmem:[#allocation1 + $0x28] sm:$0xff pattern:$0x73625140]
    %v72 = vpack.c.bf16 %v60, %v60
    %v73 = vpack.c.bf16 %v61, %v61
    %v74 = vpack.c.bf16 %v62, %v62
    %v75 = vpack.c.bf16 %v63, %v63
    %v76 = vpack.c.bf16 %v64, %v64
    %v77 = vpack.c.bf16 %v65, %v65
    %v78 = vld [vmem:[#allocation6] sm:$0xf]
    %v79 = vld [vmem:[#allocation6 + $0x4] sm:$0xf]
    %v80 = vld [vmem:[#allocation6 + $0x8] sm:$0xf]
    %v81 = vld [vmem:[#allocation6 + $0xc] sm:$0xf]
    %v82 = vld [vmem:[#allocation6 + $0x10] sm:$0xf]
    %v83 = vld [vmem:[#allocation6 + $0x14] sm:$0xf]
    %v84 = vld [vmem:[#allocation6 + $0x18] sm:$0xf]
    %v85 = vld [vmem:[#allocation6 + $0x1c] sm:$0xf]
    %v86 = vld [vmem:[#allocation6 + $0x20] sm:$0xf]
    %v87 = vld [vmem:[#allocation6 + $0x24] sm:$0xf]
    %v88 = vld [vmem:[#allocation6 + $0x28] sm:$0xf]
    %v89 = vld [vmem:[#allocation6 + $0x2c] sm:$0xf]
    %v90 = vld [vmem:[#allocation6 + $0x30] sm:$0xf]
    %v91 = vld [vmem:[#allocation6 + $0x34] sm:$0xf]
    %v92 = vld [vmem:[#allocation6 + $0x38] sm:$0xf]
    %v93 = vld [vmem:[#allocation6 + $0x3c] sm:$0xf]
    %v94 = vld [vmem:[#allocation6 + $0x40] sm:$0xf]
    %v95 = vld [vmem:[#allocation6 + $0x44] sm:$0xf]
    %v96 = vld [vmem:[#allocation6 + $0x48] sm:$0xf]
    %v97 = vld [vmem:[#allocation6 + $0x4c] sm:$0xf]
    %v98 = vld [vmem:[#allocation6 + $0x50] sm:$0xf]
    %v99 = vld [vmem:[#allocation6 + $0x54] sm:$0xf]
    %v100 = vld [vmem:[#allocation6 + $0x58] sm:$0xf]
    %v101 = vld [vmem:[#allocation6 + $0x5c] sm:$0xf]
    %v102 = vld [vmem:[#allocation6 + $0x60] sm:$0xf]
    %v103 = vld [vmem:[#allocation6 + $0x64] sm:$0xf]
    %v104 = vld [vmem:[#allocation6 + $0x68] sm:$0xf]
    %v105 = vld [vmem:[#allocation6 + $0x6c] sm:$0xf]
    %v106 = vld [vmem:[#allocation6 + $0x70] sm:$0xf]
    %v107 = vld [vmem:[#allocation6 + $0x74] sm:$0xf]
    %v108 = vld [vmem:[#allocation6 + $0x78] sm:$0xf]
    %v109 = vld [vmem:[#allocation6 + $0x7c] sm:$0xf]
    %v110 = vld [vmem:[#allocation6 + $0x80] sm:$0xf]
    %v111 = vld [vmem:[#allocation6 + $0x84] sm:$0xf]
    %v112 = vld [vmem:[#allocation6 + $0x88] sm:$0xf]
    %v113 = vld [vmem:[#allocation6 + $0x8c] sm:$0xf]
    %v114 = vld [vmem:[#allocation6 + $0x90] sm:$0xf]
    %v115 = vld [vmem:[#allocation6 + $0x94] sm:$0xf]
    %v116 = vld [vmem:[#allocation6 + $0x98] sm:$0xf]
    %v117 = vld [vmem:[#allocation6 + $0x9c] sm:$0xf]
    %v118 = vld [vmem:[#allocation6 + $0xa0] sm:$0xf]
    %v119 = vld [vmem:[#allocation6 + $0xa4] sm:$0xf]
    %v120 = vld [vmem:[#allocation6 + $0xa8] sm:$0xf]
    %v121 = vld [vmem:[#allocation6 + $0xac] sm:$0xf]
    %v122 = vld [vmem:[#allocation6 + $0xb0] sm:$0xf]
    %v123 = vld [vmem:[#allocation6 + $0xb4] sm:$0xf]
    %v124 = vld [vmem:[#allocation6 + $0xb8] sm:$0xf]
    %v125 = vld [vmem:[#allocation6 + $0xbc] sm:$0xf]
    %v126 = vld [vmem:[#allocation6 + $0xc0] sm:$0xf]
    %v127 = vld [vmem:[#allocation6 + $0xc4] sm:$0xf]
    %v128 = vld [vmem:[#allocation6 + $0xc8] sm:$0xf]
    %v129 = vld [vmem:[#allocation6 + $0xcc] sm:$0xf]
    %v130 = vld [vmem:[#allocation6 + $0xd0] sm:$0xf]
    %v131 = vld [vmem:[#allocation6 + $0xd4] sm:$0xf]
    %v132 = vld [vmem:[#allocation6 + $0xd8] sm:$0xf]
    %v133 = vld [vmem:[#allocation6 + $0xdc] sm:$0xf]
    %v134 = vld [vmem:[#allocation6 + $0xe0] sm:$0xf]
    %v135 = vld [vmem:[#allocation6 + $0xe4] sm:$0xf]
    %v136 = vld [vmem:[#allocation6 + $0xe8] sm:$0xf]
    %v137 = vld [vmem:[#allocation6 + $0xec] sm:$0xf]
    %v138 = vld [vmem:[#allocation6 + $0xf0] sm:$0xf]
    %v139 = vld [vmem:[#allocation6 + $0xf4] sm:$0xf]
    %v140 = vld [vmem:[#allocation6 + $0xf8] sm:$0xf]
    %v141 = vld [vmem:[#allocation6 + $0xfc] sm:$0xf]
    %v142 = vld [vmem:[#allocation6 + $0x100] sm:$0xf]
    %v143 = vld [vmem:[#allocation6 + $0x104] sm:$0xf]
    %v144 = vld [vmem:[#allocation6 + $0x108] sm:$0xf]
    %v145 = vld [vmem:[#allocation6 + $0x10c] sm:$0xf]
    %v146 = vld [vmem:[#allocation6 + $0x110] sm:$0xf]
    %v147 = vld [vmem:[#allocation6 + $0x114] sm:$0xf]
    %v148 = vld [vmem:[#allocation6 + $0x118] sm:$0xf]
    %v149 = vld [vmem:[#allocation6 + $0x11c] sm:$0xf]
    %v150 = vld [vmem:[#allocation6 + $0x120] sm:$0xf]
    %v151 = vld [vmem:[#allocation6 + $0x124] sm:$0xf]
    %v152 = vld [vmem:[#allocation6 + $0x128] sm:$0xf]
    %v153 = vld [vmem:[#allocation6 + $0x12c] sm:$0xf]
    %v154 = vld [vmem:[#allocation6 + $0x130] sm:$0xf]
    %v155 = vld [vmem:[#allocation6 + $0x134] sm:$0xf]
    %v156 = vld [vmem:[#allocation6 + $0x138] sm:$0xf]
    %v157 = vld [vmem:[#allocation6 + $0x13c] sm:$0xf]
    %v158 = vld [vmem:[#allocation6 + $0x140] sm:$0xf]
    %v159 = vld [vmem:[#allocation6 + $0x144] sm:$0xf]
    %v160 = vld [vmem:[#allocation6 + $0x148] sm:$0xf]
    %v161 = vld [vmem:[#allocation6 + $0x14c] sm:$0xf]
    %v162 = vld [vmem:[#allocation6 + $0x150] sm:$0xf]
    %v163 = vld [vmem:[#allocation6 + $0x154] sm:$0xf]
    %v164 = vld [vmem:[#allocation6 + $0x158] sm:$0xf]
    %v165 = vld [vmem:[#allocation6 + $0x15c] sm:$0xf]
    %v166 = vld [vmem:[#allocation6 + $0x160] sm:$0xf]
    %v167 = vld [vmem:[#allocation6 + $0x164] sm:$0xf]
    %v168 = vld [vmem:[#allocation6 + $0x168] sm:$0xf]
    %v169 = vld [vmem:[#allocation6 + $0x16c] sm:$0xf]
    %v170 = vld [vmem:[#allocation6 + $0x170] sm:$0xf]
    %v171 = vld [vmem:[#allocation6 + $0x174] sm:$0xf]
    %v172 = vld [vmem:[#allocation6 + $0x178] sm:$0xf]
    %v173 = vld [vmem:[#allocation6 + $0x17c] sm:$0xf]
    %v174 = vld [vmem:[%s2] sm:$0x1]
    %v176 = vperm.slane %v174, 0
    %v274 = vunpack.c.l.b16 %v78
    %v275 = vunpack.c.l.b16 %v79
    %v276 = vunpack.c.l.b16 %v80
    %v277 = vunpack.c.l.b16 %v81
    %v278 = vunpack.c.l.b16 %v82
    %v279 = vunpack.c.l.b16 %v83
    %v280 = vunpack.c.l.b16 %v84
    %v281 = vunpack.c.l.b16 %v85
    %v282 = vunpack.c.l.b16 %v86
    %v283 = vunpack.c.l.b16 %v87
    %v284 = vunpack.c.l.b16 %v88
    %v285 = vunpack.c.l.b16 %v89
    %v286 = vunpack.c.l.b16 %v90
    %v287 = vunpack.c.l.b16 %v91
    %v288 = vunpack.c.l.b16 %v92
    %v289 = vunpack.c.l.b16 %v93
    %v290 = vunpack.c.l.b16 %v94
    %v291 = vunpack.c.l.b16 %v95
    %v292 = vunpack.c.l.b16 %v96
    %v293 = vunpack.c.l.b16 %v97
    %v294 = vunpack.c.l.b16 %v98
    %v295 = vunpack.c.l.b16 %v99
    %v296 = vunpack.c.l.b16 %v100
    %v297 = vunpack.c.l.b16 %v101
    %v298 = vunpack.c.l.b16 %v102
    %v299 = vunpack.c.l.b16 %v103
    %v300 = vunpack.c.l.b16 %v104
    %v301 = vunpack.c.l.b16 %v105
    %v302 = vunpack.c.l.b16 %v106
    %v303 = vunpack.c.l.b16 %v107
    %v304 = vunpack.c.l.b16 %v108
    %v305 = vunpack.c.l.b16 %v109
    %v306 = vunpack.c.l.b16 %v110
    %v307 = vunpack.c.l.b16 %v111
    %v308 = vunpack.c.l.b16 %v112
    %v309 = vunpack.c.l.b16 %v113
    %v310 = vunpack.c.l.b16 %v114
    %v311 = vunpack.c.l.b16 %v115
    %v312 = vunpack.c.l.b16 %v116
    %v313 = vunpack.c.l.b16 %v117
    %v314 = vunpack.c.l.b16 %v118
    %v315 = vunpack.c.l.b16 %v119
    %v316 = vunpack.c.l.b16 %v120
    %v317 = vunpack.c.l.b16 %v121
    %v318 = vunpack.c.l.b16 %v122
    %v319 = vunpack.c.l.b16 %v123
    %v320 = vunpack.c.l.b16 %v124
    %v321 = vunpack.c.l.b16 %v125
    %v322 = vunpack.c.l.b16 %v126
    %v323 = vunpack.c.l.b16 %v127
    %v324 = vunpack.c.l.b16 %v128
    %v325 = vunpack.c.l.b16 %v129
    %v326 = vunpack.c.l.b16 %v130
    %v327 = vunpack.c.l.b16 %v131
    %v328 = vunpack.c.l.b16 %v132
    %v329 = vunpack.c.l.b16 %v133
    %v330 = vunpack.c.l.b16 %v134
    %v331 = vunpack.c.l.b16 %v135
    %v332 = vunpack.c.l.b16 %v136
    %v333 = vunpack.c.l.b16 %v137
    %v334 = vunpack.c.l.b16 %v138
    %v335 = vunpack.c.l.b16 %v139
    %v336 = vunpack.c.l.b16 %v140
    %v337 = vunpack.c.l.b16 %v141
    %v338 = vunpack.c.l.b16 %v142
    %v339 = vunpack.c.l.b16 %v143
    %v340 = vunpack.c.l.b16 %v144
    %v341 = vunpack.c.l.b16 %v145
    %v342 = vunpack.c.l.b16 %v146
    %v343 = vunpack.c.l.b16 %v147
    %v344 = vunpack.c.l.b16 %v148
    %v345 = vunpack.c.l.b16 %v149
    %v346 = vunpack.c.l.b16 %v150
    %v347 = vunpack.c.l.b16 %v151
    %v348 = vunpack.c.l.b16 %v152
    %v349 = vunpack.c.l.b16 %v153
    %v350 = vunpack.c.l.b16 %v154
    %v351 = vunpack.c.l.b16 %v155
    %v352 = vunpack.c.l.b16 %v156
    %v353 = vunpack.c.l.b16 %v157
    %v354 = vunpack.c.l.b16 %v158
    %v355 = vunpack.c.l.b16 %v159
    %v356 = vunpack.c.l.b16 %v160
    %v357 = vunpack.c.l.b16 %v161
    %v358 = vunpack.c.l.b16 %v162
    %v359 = vunpack.c.l.b16 %v163
    %v360 = vunpack.c.l.b16 %v164
    %v361 = vunpack.c.l.b16 %v165
    %v362 = vunpack.c.l.b16 %v166
    %v363 = vunpack.c.l.b16 %v167
    %v364 = vunpack.c.l.b16 %v168
    %v365 = vunpack.c.l.b16 %v169
    %v366 = vunpack.c.l.b16 %v170
    %v367 = vunpack.c.l.b16 %v171
    %v368 = vunpack.c.l.b16 %v172
    %v369 = vunpack.c.l.b16 %v173
    %v370 = vpack.c.b16 %v275, %v274
    %v371 = vpack.c.b16 %v277, %v276
    %v372 = vpack.c.b16 %v279, %v278
    %v373 = vpack.c.b16 %v281, %v280
    %v374 = vpack.c.b16 %v283, %v282
    %v375 = vpack.c.b16 %v285, %v284
    %v376 = vpack.c.b16 %v287, %v286
    %v377 = vpack.c.b16 %v289, %v288
    %v378 = vpack.c.b16 %v291, %v290
    %v379 = vpack.c.b16 %v293, %v292
    %v380 = vpack.c.b16 %v295, %v294
    %v381 = vpack.c.b16 %v297, %v296
    %v382 = vpack.c.b16 %v299, %v298
    %v383 = vpack.c.b16 %v301, %v300
    %v384 = vpack.c.b16 %v303, %v302
    %v385 = vpack.c.b16 %v305, %v304
    %v386 = vpack.c.b16 %v307, %v306
    %v387 = vpack.c.b16 %v309, %v308
    %v388 = vpack.c.b16 %v311, %v310
    %v389 = vpack.c.b16 %v313, %v312
    %v390 = vpack.c.b16 %v315, %v314
    %v391 = vpack.c.b16 %v317, %v316
    %v392 = vpack.c.b16 %v319, %v318
    %v393 = vpack.c.b16 %v321, %v320
    %v394 = vpack.c.b16 %v323, %v322
    %v395 = vpack.c.b16 %v325, %v324
    %v396 = vpack.c.b16 %v327, %v326
    %v397 = vpack.c.b16 %v329, %v328
    %v398 = vpack.c.b16 %v331, %v330
    %v399 = vpack.c.b16 %v333, %v332
    %v400 = vpack.c.b16 %v335, %v334
    %v401 = vpack.c.b16 %v337, %v336
    %v402 = vpack.c.b16 %v339, %v338
    %v403 = vpack.c.b16 %v341, %v340
    %v404 = vpack.c.b16 %v343, %v342
    %v405 = vpack.c.b16 %v345, %v344
    %v406 = vpack.c.b16 %v347, %v346
    %v407 = vpack.c.b16 %v349, %v348
    %v408 = vpack.c.b16 %v351, %v350
    %v409 = vpack.c.b16 %v353, %v352
    %v410 = vpack.c.b16 %v355, %v354
    %v411 = vpack.c.b16 %v357, %v356
    %v412 = vpack.c.b16 %v359, %v358
    %v413 = vpack.c.b16 %v361, %v360
    %v414 = vpack.c.b16 %v363, %v362
    %v415 = vpack.c.b16 %v365, %v364
    %v416 = vpack.c.b16 %v367, %v366
    %v417 = vpack.c.b16 %v369, %v368
    %466 = vmatpush.bf16.msra.mxu0 %v377
    %467 = vmatpush.bf16.msra.mxu0 %v376
    %468 = vmatpush.bf16.msra.mxu0 %v375
    %469 = vmatpush.bf16.msra.mxu0 %v374
    %470 = vmatpush.bf16.msra.mxu0 %v373
    %471 = vmatpush.bf16.msra.mxu0 %v372
    %472 = vmatpush.bf16.msra.mxu0 %v371
    %473 = vmatpush.bf16.msra.mxu0 %v370
    %474 = vmatmul.bf16.gmra.mxu0 %v72
    %v475 = vpop.f32.mrf.mxu0
    %v476 = vadd.f32 %v176, %v475
    %v477 = vpop.f32.mrf.mxu0
    %478 = vdwg.mxu0
    %479 = vmatpush.bf16.msra.mxu0 %v385
    %480 = vmatpush.bf16.msra.mxu0 %v384
    %481 = vmatpush.bf16.msra.mxu0 %v383
    %482 = vmatpush.bf16.msra.mxu0 %v382
    %483 = vmatpush.bf16.msra.mxu0 %v381
    %484 = vmatpush.bf16.msra.mxu0 %v380
    %485 = vmatpush.bf16.msra.mxu0 %v379
    %486 = vmatpush.bf16.msra.mxu0 %v378
    %487 = vmatmul.bf16.gmra.mxu0 %v73
    %v488 = vpop.f32.mrf.mxu0
    %v489 = vadd.f32 %v476, %v488
    %v490 = vpop.f32.mrf.mxu0
    %491 = vdwg.mxu0
    %492 = vmatpush.bf16.msra.mxu0 %v393
    %493 = vmatpush.bf16.msra.mxu0 %v392
    %494 = vmatpush.bf16.msra.mxu0 %v391
    %495 = vmatpush.bf16.msra.mxu0 %v390
    %496 = vmatpush.bf16.msra.mxu0 %v389
    %497 = vmatpush.bf16.msra.mxu0 %v388
    %498 = vmatpush.bf16.msra.mxu0 %v387
    %499 = vmatpush.bf16.msra.mxu0 %v386
    %500 = vmatmul.bf16.gmra.mxu0 %v74
    %v501 = vpop.f32.mrf.mxu0
    %v502 = vadd.f32 %v489, %v501
    %v503 = vpop.f32.mrf.mxu0
    %504 = vdwg.mxu0
    %505 = vmatpush.bf16.msra.mxu0 %v401
    %506 = vmatpush.bf16.msra.mxu0 %v400
    %507 = vmatpush.bf16.msra.mxu0 %v399
    %508 = vmatpush.bf16.msra.mxu0 %v398
    %509 = vmatpush.bf16.msra.mxu0 %v397
    %510 = vmatpush.bf16.msra.mxu0 %v396
    %511 = vmatpush.bf16.msra.mxu0 %v395
    %512 = vmatpush.bf16.msra.mxu0 %v394
    %513 = vmatmul.bf16.gmra.mxu0 %v75
    %v514 = vpop.f32.mrf.mxu0
    %v515 = vadd.f32 %v502, %v514
    %v516 = vpop.f32.mrf.mxu0
    %517 = vdwg.mxu0
    %518 = vmatpush.bf16.msra.mxu0 %v409
    %519 = vmatpush.bf16.msra.mxu0 %v408
    %520 = vmatpush.bf16.msra.mxu0 %v407
    %521 = vmatpush.bf16.msra.mxu0 %v406
    %522 = vmatpush.bf16.msra.mxu0 %v405
    %523 = vmatpush.bf16.msra.mxu0 %v404
    %524 = vmatpush.bf16.msra.mxu0 %v403
    %525 = vmatpush.bf16.msra.mxu0 %v402
    %526 = vmatmul.bf16.gmra.mxu0 %v76
    %v527 = vpop.f32.mrf.mxu0
    %v528 = vadd.f32 %v515, %v527
    %v529 = vpop.f32.mrf.mxu0
    %530 = vdwg.mxu0
    %531 = vmatpush.bf16.msra.mxu0 %v417
    %532 = vmatpush.bf16.msra.mxu0 %v416
    %533 = vmatpush.bf16.msra.mxu0 %v415
    %534 = vmatpush.bf16.msra.mxu0 %v414
    %535 = vmatpush.bf16.msra.mxu0 %v413
    %536 = vmatpush.bf16.msra.mxu0 %v412
    %537 = vmatpush.bf16.msra.mxu0 %v411
    %538 = vmatpush.bf16.msra.mxu0 %v410
    %539 = vmatmul.bf16.gmra.mxu0 %v77
    %v540 = vpop.f32.mrf.mxu0
    %v541 = vadd.f32 %v528, %v540
    %v542 = vpop.f32.mrf.mxu0
    %543 = vdwg.mxu0
    %v544 = vmax.f32 %v541, 0.0
    %v545 = vld [vmem:[%s3] sm:$0x1]
    %v547 = vperm.slane %v545, 0
    %v549 = vmul.f32 %v544, %v547
    %vm550 = vcmask 1041408
    %v551 = vsel %vm550, %v549, 0.0
    %552 = vadd.xlane.f32.xlu0 %v551
    %v553 = vpop.xlane.xlu0 %552
    %v554 = vld [vmem:[#allocation2] sm:$0x1]
    %v556 = vperm.slane %v554, 0
    %v558 = vadd.f32 %v553, %v556
    %v559 = vmax.f32 %v558, 0.0
    %v560 = vand.u32 2147483647, %v558
    %v561 = vsub.f32 0.0, %v560
    %v562 = vmul.f32 %v561, 1.442695
    %v563 = vpow.pop %v562
    %v564 = vadd.f32 %v563, 1.0
    %v565 = vlog2.pop %v564
    %v566 = vmul.f32 %v565, 0.6931472
    %v567 = vmul.f32 -0.5, %v563
    %v568 = vadd.f32 %v567, 1.0
    %v569 = vmul.f32 %v568, %v563
    %v570 = vand.u32 2147483647, %v563
    %vm571 = vcmp.lt.f32.partialorder %v570, 0.0004427343
    %v572 = vsel %vm571, %v569, %v566
    %v573 = vadd.f32 %v559, %v572
    %v574 = vsub.f32 0.0, %v573
    %v575 = vsub.f32 %v558, %v573
    %577 = vrot.lane.b32.xlu0 %v575, 1
    %v578 = vpop.permute.xlu0 %577
    %vm580 = vcmask 7168
    %v581 = vsel %vm580, %v574, %v578
    %vm582 = vcmask 9216
    %583 = vst.msk [vmem:[#allocation8] sm:$0x3] %vm582, %v581
    // Predicated region
    $region30: #{tpu_custom_call.1} parent=1 // pred_check
      _
    $region31: #{tpu_custom_call.1} parent=1 // pred_check_branch
      %585 = sbr.rel (0) target = $region33
    $region32: #{tpu_custom_call.1} parent=1 // pred_region
      %587 = vsyncadd [#allocation5], 0
      %s589 = sshll.u32 [#allocation8], 4
      %s590 = int_to_ptr.vmem [resolvable:$true] %s589
      %s591 = sshll.u32 %s5, 4
      %s592 = int_to_ptr.hbm [resolvable:$true] %s591
      %594 = dma.vmem_to_hbm [thread:$0]  %s590, 32, %s592, [#allocation5]
    $region33: #{tpu_custom_call.1} parent=1 // pred_fallthru
      _
    // Predicated region
    $region34: #{tpu_custom_call.1} parent=1 // pred_check
      _
    $region35: #{tpu_custom_call.1} parent=1 // pred_check_branch
      %596 = sbr.rel (0) target = $region37
    $region36: #{tpu_custom_call.1} parent=1 // pred_region
      %598 = dma.done [#allocation5], 32
    $region37: #{tpu_custom_call.1} parent=1 // pred_fallthru
      _
    %599 = vsyncpa [#allocation4], 1
    %600 = vsyncpa [#allocation7], 1
    %601 = vsyncpa [#allocation5], 1

</llo_original>
